<compile_context>
chip_gen: v7x
topology: tpu7x:2x2x1
jax: 0.10.0
libtpu: 0.0.40
codegen_flags: <defaults>
</compile_context>

<pallas_src>
import functools

import jax
import jax.numpy as jnp
from jax.experimental import pallas as pl
from jax.experimental.pallas import tpu as pltpu

_LANE = 128
_MAX_BLOCK_ROWS = 4096            # hard cap (keeps f32-widened intermediates small)
_TARGET_BLOCK_BYTES = 1 << 20     # ~1 MiB per input per grid step
_NUM_SPLITS = 2                   # leading "parallel" axis (v7x has 2 TensorCores)
_VMEM_LIMIT_BYTES = 32 * 1024 * 1024


def _laplace_kernel(*refs, order, log_dispersion, min_noise, rows, block_rows,
                    blocks_per_split, num_full_blocks, needs_mask):
    if order == 1:
        c_ref, y_ref, out_ref = refs
        d_ref = None
    else:
        c_ref, d_ref, y_ref, out_ref = refs

    split = pl.program_id(0)   # "parallel" axis (core split on v7x)
    i = pl.program_id(1)       # "arbitrary" reduction axis

    @pl.when(i == 0)
    def _init():
        out_ref[...] = jnp.zeros_like(out_ref)

    c = c_ref[...].astype(jnp.float32)
    yv = y_ref[...].astype(jnp.float32)
    dev = jnp.abs(c - yv)

    if order == 1:
        per = dev
    else:
        d = d_ref[...].astype(jnp.float32)
        if log_dispersion:
            mad = jnp.exp(d)
            log_mad = d
        else:
            mad = d
            log_mad = jnp.log(d + jnp.float32(1e-9))
        num = dev if min_noise == 0.0 else dev + jnp.float32(min_noise)
        denom = mad + jnp.float32(1e-9)
        # EUP reciprocal (free slot) + one Newton step (2 VALU ops) instead of
        # the multi-op VALU divide sequence; ~exact for finite denominators.
        inv = pl.reciprocal(denom, approx=True)
        inv = inv * (jnp.float32(2.0) - denom * inv)
        per = num * inv + log_mad

    def _accum(vals):
        # (block_rows,128) -> (block_rows//8, 8, 128) splits exactly on vreg
        # tiles (free), then pure vreg-wise adds down to one (8,128) tile.
        red = vals.reshape(block_rows // 8, 8, _LANE).sum(axis=0)
        out_ref[0] = out_ref[0] + red

    if needs_mask:
        g = split * blocks_per_split + i          # global row-block index

        @pl.when(g < num_full_blocks)
        def _full():
            _accum(per)

        @pl.when(g >= num_full_blocks)
        def _trailing():
            # Only the partial / overflow block(s) pay for the mask. `valid`
            # may be <= 0 for an overflow block (then everything is masked).
            valid = rows - g * block_rows
            row = jax.lax.broadcasted_iota(jnp.int32, per.shape, 0)
            _accum(jnp.where(row < valid, per, 0.0))
    else:
        _accum(per)


def _per_element_loss(c, d, y, *, order, log_dispersion, min_noise):
    dev = jnp.abs(c.astype(jnp.float32) - y.astype(jnp.float32))
    if order == 1:
        return dev
    df = d.astype(jnp.float32)
    if log_dispersion:
        mad = jnp.exp(df)
        log_mad = df
    else:
        mad = df
        log_mad = jnp.log(df + 1e-9)
    return (dev + min_noise) / (mad + 1e-9) + log_mad


def laplace_mle_loss(center, dispersion, y, *, order=2, min_noise=0.0,
                     log_dispersion=True, normalizer=None,
                     max_block_rows=_MAX_BLOCK_ROWS):
    """Pallas implementation of LaplaceMLELoss.forward.

    Note: `normalizer` and the element count are folded into a static Python
    scale at trace time (matches torch's `if not normalizer:` truthiness);
    traced/runtime normalizers are not supported.
    """
    n = int(center.size)
    rows = n // _LANE                 # 128-aligned prefix handled by the kernel
    n_aligned = rows * _LANE
    n_tail = n - n_aligned

    if order == 1:
        scale = 1.0 / n               # torch returns deviation.mean() regardless
    else:
        scale = (1.0 / float(normalizer)) if normalizer else (1.0 / n)

    inputs_full = (center, y) if order == 1 else (center, dispersion, y)
    flats = [x.reshape(-1) for x in inputs_full]

    total = jnp.float32(0.0)

    if rows > 0:
        # Dtype-aware sublane rounding: 8 rows (f32), 16 (bf16/f16), 32 (int8).
        sub_mult = max(max(8, 32 // jnp.dtype(x.dtype).itemsize)
                       for x in inputs_full)
        itemsize = max(jnp.dtype(x.dtype).itemsize for x in inputs_full)
        cap = min(int(max_block_rows), _TARGET_BLOCK_BYTES // (_LANE * itemsize))
        cap = max(sub_mult, (cap // sub_mult) * sub_mult)
        block_rows = min(cap, -(-rows // sub_mult) * sub_mult)

        num_blocks = -(-rows // block_rows)
        num_splits = _NUM_SPLITS if num_blocks >= _NUM_SPLITS else 1
        bps = -(-num_blocks // num_splits)           # blocks per split
        num_full_blocks = rows // block_rows
        needs_mask = (num_splits * bps * block_rows) != rows

        if num_splits * bps == num_blocks:
            in_index = lambda s, i: (s * bps + i, 0)
        else:
            # Overflow blocks (past the last real block) re-read the last real
            # block and are fully masked in-kernel.
            in_index = lambda s, i: (jnp.minimum(s * bps + i, num_blocks - 1), 0)

        def _as_rows(flat):
            f = flat
            if f.shape[0] != n_aligned:
                f = jax.lax.slice(f, (0,), (n_aligned,))
            return f.reshape(rows, _LANE)

        kernel_inputs = [_as_rows(f) for f in flats]

        kernel = functools.partial(
            _laplace_kernel,
            order=order,
            log_dispersion=bool(log_dispersion),
            min_noise=float(min_noise),
            rows=rows,
            block_rows=block_rows,
            blocks_per_split=bps,
            num_full_blocks=num_full_blocks,
            needs_mask=needs_mask,
        )

        partials = pl.pallas_call(
            kernel,
            out_shape=jax.ShapeDtypeStruct((num_splits, 8, _LANE), jnp.float32),
            grid_spec=pltpu.PrefetchScalarGridSpec(
                num_scalar_prefetch=0,
                grid=(num_splits, bps),
                in_specs=[pl.BlockSpec((block_rows, _LANE), in_index)]
                         * len(kernel_inputs),
                out_specs=pl.BlockSpec((1, 8, _LANE), lambda s, i: (s, 0, 0)),
            ),
            compiler_params=pltpu.CompilerParams(
                dimension_semantics=("parallel", "arbitrary"),
                vmem_limit_bytes=_VMEM_LIMIT_BYTES),
        )(*kernel_inputs)

        total = total + jnp.sum(partials)

    if n_tail > 0:
        # <128-element ragged tail: cheaper as a tiny plain-JAX sum than an
        # O(N) pad/copy of every input just to lane-align it.
        tails = [f[n_aligned:] for f in flats]
        if order == 1:
            c_t, y_t = tails
            d_t = None
        else:
            c_t, d_t, y_t = tails
        total = total + jnp.sum(_per_element_loss(
            c_t, d_t, y_t, order=order, log_dispersion=bool(log_dispersion),
            min_noise=float(min_noise)))

    # TODO(synk): inputs with n < 128 never touch the Pallas kernel (pure
    # plain-JAX tail path above).
    return total * jnp.float32(scale)


def _reference(center, dispersion, y, *, order=2, min_noise=0.0,
               log_dispersion=True, normalizer=None):
    c = center.astype(jnp.float32)
    yv = y.astype(jnp.float32)
    dev = jnp.abs(c - yv)
    if order == 1:
        return jnp.mean(dev)
    d = dispersion.astype(jnp.float32)
    if log_dispersion:
        mad = jnp.exp(d)
        log_mad = d
    else:
        mad = d
        log_mad = jnp.log(d + 1e-9)
    loss = (dev + min_noise) / (mad + 1e-9) + log_mad
    if not normalizer:
        return jnp.mean(loss)
    return jnp.sum(loss) / normalizer


if __name__ == "__main__":
    key = jax.random.PRNGKey(0)
    k1, k2, k3, k4, k5, k6, k7, k8, k9 = jax.random.split(key, 9)

    shape = (2, 4, 16, 16)  # NCHW-ish, n = 2048 (128-divisible)
    center = jax.random.normal(k1, shape, dtype=jnp.float32)
    y = center + 0.1 * jax.random.normal(k2, shape, dtype=jnp.float32)
    log_disp = 0.5 * jax.random.normal(k3, shape, dtype=jnp.float32)
    pos_disp = jnp.abs(log_disp) + 0.5  # strictly positive for log_dispersion=False

    results = []

    # 1) default: order=2, log_dispersion=True, mean reduction
    out = laplace_mle_loss(center, log_disp, y)
    ref = _reference(center, log_disp, y)
    results.append((out, ref, 1e-4))

    # 2) log_dispersion=False path
    out = laplace_mle_loss(center, pos_disp, y, log_dispersion=False)
    ref = _reference(center, pos_disp, y, log_dispersion=False)
    results.append((out, ref, 1e-4))

    # 3) order=1 (pure L1 mean, dispersion unused)
    out = laplace_mle_loss(center, log_disp, y, order=1)
    ref = _reference(center, log_disp, y, order=1)
    results.append((out, ref, 1e-5))

    # 4) explicit normalizer (sum / normalizer)
    out = laplace_mle_loss(center, log_disp, y, normalizer=64.0)
    ref = _reference(center, log_disp, y, normalizer=64.0)
    results.append((out, ref, 1e-4))

    # 5) multi-block, 2-split grid path (even block count, no mask)
    out = laplace_mle_loss(center, log_disp, y, max_block_rows=8)
    ref = _reference(center, log_disp, y)
    results.append((out, ref, 1e-4))

    # 6) odd block count -> overflow block on split 1 (clamped + fully masked)
    shp3 = (2, 4, 384)  # n = 3072 -> 24 row-blocks of 8 -> 3 blocks, 2 splits
    c3 = jax.random.normal(k7, shp3, dtype=jnp.float32)
    y3 = c3 + 0.15 * jax.random.normal(k8, shp3, dtype=jnp.float32)
    d3 = 0.4 * jax.random.normal(k9, shp3, dtype=jnp.float32)
    out = laplace_mle_loss(c3, d3, y3, max_block_rows=8)
    ref = _reference(c3, d3, y3)
    results.append((out, ref, 1e-4))

    # 7) non-128-divisible element count + nonzero min_noise
    #    (partial row-block mask in-kernel + ragged tail in the wrapper)
    shp2 = (2, 3, 7, 5)  # n = 210
    c2 = jax.random.normal(k4, shp2, dtype=jnp.float32)
    y2 = c2 + 0.2 * jax.random.normal(k5, shp2, dtype=jnp.float32)
    d2 = 0.3 * jax.random.normal(k6, shp2, dtype=jnp.float32)
    out = laplace_mle_loss(c2, d2, y2, min_noise=0.5)
    ref = _reference(c2, d2, y2, min_noise=0.5)
    results.append((out, ref, 1e-4))

    # 8) native bf16 inputs (no wrapper cast; 16-row sublane packing in-kernel)
    out = laplace_mle_loss(center.astype(jnp.bfloat16),
                           log_disp.astype(jnp.bfloat16),
                           y.astype(jnp.bfloat16))
    ref = _reference(center.astype(jnp.bfloat16),
                     log_disp.astype(jnp.bfloat16),
                     y.astype(jnp.bfloat16))
    results.append((out, ref, 5e-4))

    jax.block_until_ready([r[0] for r in results])

    for got, want, tol in results:
        assert jnp.allclose(got, want, rtol=tol, atol=tol), (got, want)

    print("KERNEL_OK")
</pallas_src>

<mosaic_0001>
module attributes {stable_mosaic.version = 11 : i64} {
  func.func @_laplace_kernel(%arg0: i32, %arg1: i32, %arg2: memref<16x128xf32, #tpu.memory_space<vmem>>, %arg3: memref<16x128xf32, #tpu.memory_space<vmem>>, %arg4: memref<16x128xf32, #tpu.memory_space<vmem>>, %arg5: memref<1x8x128xf32, #tpu.memory_space<vmem>>) attributes {dimension_semantics = [#tpu.dimension_semantics<parallel>, #tpu.dimension_semantics<arbitrary>], iteration_bounds = array<i64: 1, 1>, scalar_prefetch = 0 : i64, scratch_operands = 0 : i64, tpu.core_type = #tpu.core_type<tc>, window_params = [{transform_indices = @transform_0, window_bounds = array<i64: 16, 128>}, {transform_indices = @transform_1, window_bounds = array<i64: 16, 128>}, {transform_indices = @transform_2, window_bounds = array<i64: 16, 128>}, {transform_indices = @transform_3, window_bounds = array<i64: 1, 8, 128>}]} {
    %c0_i32 = arith.constant 0 : i32
    %0 = arith.cmpi eq, %arg1, %c0_i32 : i32
    %1 = arith.extui %0 : i1 to i32
    %c0_i32_0 = arith.constant 0 : i32
    %2 = arith.cmpi ne, %1, %c0_i32_0 : i32
    scf.if %2 {
      %cst_14 = arith.constant 0.000000e+00 : f32
      %26 = vector.broadcast %cst_14 : f32 to vector<1x8x128xf32>
      %c0_15 = arith.constant 0 : index
      %c0_16 = arith.constant 0 : index
      %c0_17 = arith.constant 0 : index
      %27 = vector.load %arg5[%c0_15, %c0_16, %c0_17] : memref<1x8x128xf32, #tpu.memory_space<vmem>>, vector<1x8x128xf32>
      tpu.vector_store %arg5[%c0_15, %c0_16, %c0_17], %26 {strides = array<i32>} : memref<1x8x128xf32, #tpu.memory_space<vmem>>, vector<1x8x128xf32>,
    } else {
    }
    %c0 = arith.constant 0 : index
    %c0_1 = arith.constant 0 : index
    %3 = vector.load %arg2[%c0, %c0_1] : memref<16x128xf32, #tpu.memory_space<vmem>>, vector<16x128xf32>
    %c0_2 = arith.constant 0 : index
    %c0_3 = arith.constant 0 : index
    %4 = vector.load %arg4[%c0_2, %c0_3] : memref<16x128xf32, #tpu.memory_space<vmem>>, vector<16x128xf32>
    %5 = arith.subf %3, %4 : vector<16x128xf32>
    %6 = math.absf %5 : vector<16x128xf32>
    %c0_4 = arith.constant 0 : index
    %c0_5 = arith.constant 0 : index
    %7 = vector.load %arg3[%c0_4, %c0_5] : memref<16x128xf32, #tpu.memory_space<vmem>>, vector<16x128xf32>
    %8 = math.exp %7 : vector<16x128xf32>
    %cst = arith.constant 9.99999971E-10 : f32
    %9 = vector.broadcast %cst : f32 to vector<16x128xf32>
    %10 = arith.addf %8, %9 : vector<16x128xf32>
    %11 = tpu.reciprocal %10 {approx = true} : vector<16x128xf32> -> vector<16x128xf32>
    %12 = arith.mulf %10, %11 : vector<16x128xf32>
    %cst_6 = arith.constant 2.000000e+00 : f32
    %13 = vector.broadcast %cst_6 : f32 to vector<16x128xf32>
    %14 = arith.subf %13, %12 : vector<16x128xf32>
    %15 = arith.mulf %11, %14 : vector<16x128xf32>
    %16 = arith.mulf %6, %15 : vector<16x128xf32>
    %17 = arith.addf %16, %7 : vector<16x128xf32>
    %18 = vector.shape_cast %17 : vector<16x128xf32> to vector<2x8x128xf32>
    %cst_7 = arith.constant dense<0.000000e+00> : vector<8x128xf32>
    %19 = vector.multi_reduction <add>, %18, %cst_7 [0] : vector<2x8x128xf32> to vector<8x128xf32>
    %c0_8 = arith.constant 0 : index
    %c0_9 = arith.constant 0 : index
    %c0_10 = arith.constant 0 : index
    %20 = vector.load %arg5[%c0_8, %c0_9, %c0_10] : memref<1x8x128xf32, #tpu.memory_space<vmem>>, vector<1x8x128xf32>
    %21 = vector.shape_cast %20 : vector<1x8x128xf32> to vector<8x128xf32>
    %22 = arith.addf %21, %19 : vector<8x128xf32>
    %c0_11 = arith.constant 0 : index
    %c0_12 = arith.constant 0 : index
    %c0_13 = arith.constant 0 : index
    %23 = vector.load %arg5[%c0_11, %c0_12, %c0_13] : memref<1x8x128xf32, #tpu.memory_space<vmem>>, vector<1x8x128xf32>
    %24 = vector.shape_cast %23 : vector<1x8x128xf32> to vector<8x128xf32>
    %25 = vector.shape_cast %22 : vector<8x128xf32> to vector<1x8x128xf32>
    tpu.vector_store %arg5[%c0_11, %c0_12, %c0_13], %25 {strides = array<i32>} : memref<1x8x128xf32, #tpu.memory_space<vmem>>, vector<1x8x128xf32>,
    return
  }
  func.func @transform_0(%arg0: i32, %arg1: i32) -> (i32, i32) {
    %c1_i32 = arith.constant 1 : i32
    %0 = arith.muli %arg0, %c1_i32 : i32
    %1 = arith.addi %0, %arg1 : i32
    %c0_i32 = arith.constant 0 : i32
    %c0_i32_0 = arith.constant 0 : i32
    return %1, %c0_i32 : i32, i32
  }
  func.func @transform_1(%arg0: i32, %arg1: i32) -> (i32, i32) {
    %c1_i32 = arith.constant 1 : i32
    %0 = arith.muli %arg0, %c1_i32 : i32
    %1 = arith.addi %0, %arg1 : i32
    %c0_i32 = arith.constant 0 : i32
    %c0_i32_0 = arith.constant 0 : i32
    return %1, %c0_i32 : i32, i32
  }
  func.func @transform_2(%arg0: i32, %arg1: i32) -> (i32, i32) {
    %c1_i32 = arith.constant 1 : i32
    %0 = arith.muli %arg0, %c1_i32 : i32
    %1 = arith.addi %0, %arg1 : i32
    %c0_i32 = arith.constant 0 : i32
    %c0_i32_0 = arith.constant 0 : i32
    return %1, %c0_i32 : i32, i32
  }
  func.func @transform_3(%arg0: i32, %arg1: i32) -> (i32, i32, i32) {
    %c0_i32 = arith.constant 0 : i32
    %c0_i32_0 = arith.constant 0 : i32
    %c0_i32_1 = arith.constant 0 : i32
    return %arg0, %c0_i32, %c0_i32_0 : i32, i32, i32
  }
}

</mosaic_0001>

<llo_original>
// kernel: tpu_custom_call.1
$region0: #{tpu_custom_call.1}
  #allocation0 [shape = 'u32[]', space=smem, size = 0x4, offset = 0x4, fixed_abs, tag = 'smem constant byte address 0x4 - core index']
  #allocation1 [shape = 'u32[144,128]{1,0:T(1,128)}', space=vmem, size = 0x12000, scoped, tag = 'internal scratch']
  %s0 = inlined_call_operand.hbm [shape: f32[16,128], index: 0, kind: input, shape index: {}]
  %s1 = inlined_call_operand.hbm [shape: f32[16,128], index: 1, kind: input, shape index: {}]
  %s2 = inlined_call_operand.hbm [shape: f32[16,128], index: 2, kind: input, shape index: {}]
  %s3 = inlined_call_operand.hbm [shape: f32[1,8,128], index: 3, kind: output, shape index: {}]
  %s4 = sld [smem:[#allocation0]]
  $region38: #{tpu_custom_call.1} parent=0
    _
  %s6 = ssub.s32 1, %s4
  %s7 = scalar_select 0, %s6, %s4
  $region1: #{tpu_custom_call.1} parent=0
    #allocation2 [shape = 'u8[8192]{0}', space=vmem, size = 0x2000, scoped, tag = 'input window, operand 0, single buffered']
    #allocation3 [shape = 's32[1]{0}', space=sflag, size = 0x4, scoped, tag = 'scoped memory for tpu_custom_call.1']
    #allocation4 [shape = 's32[1]{0}', space=sflag, size = 0x4, scoped, tag = 'scoped memory for tpu_custom_call.1']
    #allocation5 [shape = 'u8[8192]{0}', space=vmem, size = 0x2000, scoped, tag = 'input window, operand 1, single buffered']
    #allocation6 [shape = 's32[1]{0}', space=sflag, size = 0x4, scoped, tag = 'scoped memory for tpu_custom_call.1']
    #allocation7 [shape = 'u8[8192]{0}', space=vmem, size = 0x2000, scoped, tag = 'input window, operand 2, single buffered']
    #allocation8 [shape = 'u8[4096]{0}', space=vmem, size = 0x1000, scoped, tag = 'output window, operand 0, single buffered']
    %8 = vsyncpa [#allocation3], 0
    %9 = vsyncpa [#allocation6], 0
    %10 = vsyncpa [#allocation4], 0
    // Predicated region
    $region2: #{tpu_custom_call.1} parent=1 // pred_check
      _
    $region3: #{tpu_custom_call.1} parent=1 // pred_check_branch
      %12 = sbr.rel (0) target = $region5
    $region4: #{tpu_custom_call.1} parent=1 // pred_region
      %s13 = sadd.s32 0, 0
      %s14 = smul.u32 2, %s13
      %s16 = ssub.s32 256, 256
      %17 = vsyncadd [#allocation3], %s16
      %s18 = smul.addr %s14, 128
      %s19 = scalar_lea.hbm %s0, %s18
      %s20 = sshll.u32 [#allocation2], 4
      %s21 = int_to_ptr.vmem [resolvable:$true] %s20
      %26 = dma.hbm_to_vmem [thread:$0]  %s19, 256, %s21, [#allocation3], 128, 128, 8
    $region5: #{tpu_custom_call.1} parent=1 // pred_fallthru
      _
    // Predicated region
    $region6: #{tpu_custom_call.1} parent=1 // pred_check
      _
    $region7: #{tpu_custom_call.1} parent=1 // pred_check_branch
      %28 = sbr.rel (0) target = $region9
    $region8: #{tpu_custom_call.1} parent=1 // pred_region
      %s29 = sadd.s32 0, 0
      %s30 = smul.u32 2, %s29
      %s32 = ssub.s32 256, 256
      %33 = vsyncadd [#allocation6], %s32
      %s34 = smul.addr %s30, 128
      %s35 = scalar_lea.hbm %s1, %s34
      %s36 = sshll.u32 [#allocation5], 4
      %s37 = int_to_ptr.vmem [resolvable:$true] %s36
      %42 = dma.hbm_to_vmem [thread:$0]  %s35, 256, %s37, [#allocation6], 128, 128, 8
    $region9: #{tpu_custom_call.1} parent=1 // pred_fallthru
      _
    // Predicated region
    $region10: #{tpu_custom_call.1} parent=1 // pred_check
      _
    $region11: #{tpu_custom_call.1} parent=1 // pred_check_branch
      %44 = sbr.rel (0) target = $region13
    $region12: #{tpu_custom_call.1} parent=1 // pred_region
      %s45 = sadd.s32 0, 0
      %s46 = smul.u32 2, %s45
      %s48 = ssub.s32 256, 256
      %49 = vsyncadd [#allocation6], %s48
      %s50 = smul.addr %s46, 128
      %s51 = scalar_lea.hbm %s2, %s50
      %s52 = sshll.u32 [#allocation7], 4
      %s53 = int_to_ptr.vmem [resolvable:$true] %s52
      %58 = dma.hbm_to_vmem [thread:$0]  %s51, 256, %s53, [#allocation6], 128, 128, 8
    $region13: #{tpu_custom_call.1} parent=1 // pred_fallthru
      _
    // Predicated region
    $region14: #{tpu_custom_call.1} parent=1 // pred_check
      _
    $region15: #{tpu_custom_call.1} parent=1 // pred_check_branch
      %60 = sbr.rel (0) target = $region17
    $region16: #{tpu_custom_call.1} parent=1 // pred_region
      %61 = dma.done [#allocation3], 256
    $region17: #{tpu_custom_call.1} parent=1 // pred_fallthru
      _
    // Predicated region
    $region18: #{tpu_custom_call.1} parent=1 // pred_check
      _
    $region19: #{tpu_custom_call.1} parent=1 // pred_check_branch
      %63 = sbr.rel (0) target = $region21
    $region20: #{tpu_custom_call.1} parent=1 // pred_region
      %64 = dma.done [#allocation6], 256
    $region21: #{tpu_custom_call.1} parent=1 // pred_fallthru
      _
    // Predicated region
    $region22: #{tpu_custom_call.1} parent=1 // pred_check
      _
    $region23: #{tpu_custom_call.1} parent=1 // pred_check_branch
      %66 = sbr.rel (0) target = $region25
    $region24: #{tpu_custom_call.1} parent=1 // pred_region
      %67 = dma.done [#allocation6], 256
    $region25: #{tpu_custom_call.1} parent=1 // pred_fallthru
      _
    %s68 = sadd.s32 0, 0
    %s69 = smul.u32 2, %s68
    %s70 = sadd.s32 0, 0
    %s71 = smul.u32 2, %s70
    %s72 = sadd.s32 0, 0
    %s73 = smul.u32 2, %s72
    %p74 = scmp.eq.s32.totalorder 0, 0
    // Predicated region
    $region26: #{tpu_custom_call.1} parent=1 // pred_check
      %p75 = pneg %p74
    $region27: #{tpu_custom_call.1} parent=1 // pred_check_branch
      %77 = sbr.rel (%p75) target = $region29
    $region28: #{tpu_custom_call.1} parent=1 // pred_region
      %78 = vst [vmem:[#allocation8] sm:$0xff] 0.0
    $region29: #{tpu_custom_call.1} parent=1 // pred_fallthru
      _
    %v79 = vld [vmem:[#allocation2] sm:$0xff]
    %v80 = vld [vmem:[#allocation2 + $0x8] sm:$0xff]
    %v81 = vld [vmem:[#allocation7] sm:$0xff]
    %v82 = vld [vmem:[#allocation7 + $0x8] sm:$0xff]
    %v83 = vsub.f32 %v79, %v81
    %v84 = vsub.f32 %v80, %v82
    %v85 = vand.u32 2147483647, %v83
    %v86 = vand.u32 2147483647, %v84
    %v87 = vld [vmem:[#allocation5] sm:$0xff]
    %v88 = vld [vmem:[#allocation5 + $0x8] sm:$0xff]
    %v89 = vmul.f32 %v87, 1.442695
    %v90 = vpow.pop %v89
    %v91 = vmul.f32 %v88, 1.442695
    %v92 = vpow.pop %v91
    %v93 = vadd.f32 %v90, 1e-09
    %v94 = vadd.f32 %v92, 1e-09
    %v95 = vrcp.pop %v93
    %v96 = vrcp.pop %v94
    %v97 = vmul.f32 %v93, %v95
    %v98 = vmul.f32 %v94, %v96
    %v99 = vsub.f32 2.0, %v97
    %v100 = vsub.f32 2.0, %v98
    %v101 = vmul.f32 %v95, %v99
    %v102 = vmul.f32 %v96, %v100
    %v103 = vmul.f32 %v85, %v101
    %v104 = vmul.f32 %v86, %v102
    %v105 = vadd.f32 %v103, %v87
    %v106 = vadd.f32 %v104, %v88
    %v107 = vadd.f32 %v105, %v106
    %v108 = vld [vmem:[#allocation8] sm:$0xff]
    %v109 = vadd.f32 %v108, %v107
    %110 = vst [vmem:[#allocation8] sm:$0xff] %v109
    // Predicated region
    $region30: #{tpu_custom_call.1} parent=1 // pred_check
      _
    $region31: #{tpu_custom_call.1} parent=1 // pred_check_branch
      %112 = sbr.rel (0) target = $region33
    $region32: #{tpu_custom_call.1} parent=1 // pred_region
      %s114 = ssub.s32 128, 128
      %115 = vsyncadd [#allocation4], %s114
      %s117 = sshll.u32 [#allocation8], 4
      %s118 = int_to_ptr.vmem [resolvable:$true] %s117
      %120 = dma.vmem_to_hbm [thread:$0]  %s118, 128, %s3, [#allocation4]
    $region33: #{tpu_custom_call.1} parent=1 // pred_fallthru
      _
    // Predicated region
    $region34: #{tpu_custom_call.1} parent=1 // pred_check
      _
    $region35: #{tpu_custom_call.1} parent=1 // pred_check_branch
      %122 = sbr.rel (0) target = $region37
    $region36: #{tpu_custom_call.1} parent=1 // pred_region
      %123 = dma.done [#allocation4], 128
    $region37: #{tpu_custom_call.1} parent=1 // pred_fallthru
      _
    %124 = vsyncpa [#allocation3], 1
    %125 = vsyncpa [#allocation6], 1
    %126 = vsyncpa [#allocation4], 1

</llo_original>
